<compile_context>
chip_gen: v7x
topology: tpu7x:2x2x1
jax: 0.10.0
libtpu: 0.0.40
codegen_flags: <defaults>
</compile_context>

<pallas_src>
import functools

import numpy as np
import jax
import jax.numpy as jnp
from jax.experimental import pallas as pl
from jax.experimental.pallas import tpu as pltpu


def _disc_loss_kernel(pred_ref, lab_ref, out_ref, card_acc, a_acc, *, sigma_dis):
    c_idx = pl.program_id(1)
    nc = pl.num_programs(1)

    c = pred_ref.shape[1]            # channels
    tn = pred_ref.shape[2]           # pixel chunk width (multiple of 128)
    l_pad = card_acc.shape[0]        # padded label count (multiple of 8)
    aw = a_acc.shape[1]              # channel-accumulator lane width (>=128)
    g = tn // 128                    # number of 128-lane groups in this chunk
    n_ch = max(1, min(4, g))         # independent accumulator chains

    # ---- per-batch init (first pixel chunk) -------------------------------
    @pl.when(c_idx == 0)
    def _():
        card_acc[...] = jnp.zeros_like(card_acc)
        a_acc[...] = jnp.zeros_like(a_acc)

    # ---- hot path: stream this pixel chunk once, 128 lanes at a time ------
    # labels 1..l_pad on sublanes; group-invariant constant (hoisted)
    ell = jax.lax.broadcasted_iota(jnp.int32, (l_pad, 128), 0) + 1
    dn = (((1,), (1,)), ((), ()))    # contract lane axes: A @ B^T

    card_parts = [jnp.zeros((l_pad, 128), jnp.float32) for _ in range(n_ch)]
    a_parts = [jnp.zeros((l_pad, c), jnp.float32) for _ in range(n_ch)]

    for gi in range(g):
        sl = pl.ds(gi * 128, 128)                        # static 128-lane slice
        pred_g = pred_ref[0, :, sl].astype(jnp.float32)  # (C, 128)
        lab_g = lab_ref[0, :, sl].astype(jnp.int32)      # (1, 128)
        onehot = (ell == lab_g).astype(jnp.float32)      # (L, 128)
        sq_g = pred_g * pred_g                           # (C, 128)
        # MXU: per-label, per-channel masked sum of squares for this group
        pa = jax.lax.dot_general(onehot, sq_g, dn,
                                 preferred_element_type=jnp.float32)  # (L, C)
        ch = gi % n_ch
        card_parts[ch] = card_parts[ch] + onehot
        a_parts[ch] = a_parts[ch] + pa

    card_p = card_parts[0]
    a_p = a_parts[0]
    for ch in range(1, n_ch):
        card_p = card_p + card_parts[ch]
        a_p = a_p + a_parts[ch]

    card_acc[...] = card_acc[...] + card_p
    if c == aw:
        a_acc[...] = a_acc[...] + a_p
    else:
        a_acc[:, 0:c] = a_acc[:, 0:c] + a_p              # lanes >= c stay zero

    # ---- per-batch finalize (last pixel chunk): O(L^2) pair math ----------
    @pl.when(c_idx == nc - 1)
    def _():
        card_full = card_acc[...]                                    # (L, 128)
        a_full = a_acc[...]                                          # (L, AW)

        # column orientation (L, 1)
        card_c = jnp.sum(card_full, axis=1, keepdims=True)
        a_c = jnp.sum(a_full, axis=1, keepdims=True)
        s_c = jnp.where(card_c > 0, a_c / (card_c * card_c), 0.0)    # ||m_i||^2

        # row orientation via tiny MXU contractions (reduce + transpose of
        # L values each): out[i, j] = sum_k acc[j, k]
        ones_card = jnp.ones((l_pad, 128), jnp.float32)
        ones_a = jnp.ones((l_pad, aw), jnp.float32)
        card_r = jax.lax.dot_general(ones_card, card_full, dn,
                                     preferred_element_type=jnp.float32)
        a_r = jax.lax.dot_general(ones_a, a_full, dn,
                                  preferred_element_type=jnp.float32)
        s_r = jnp.where(card_r > 0, a_r / (card_r * card_r), 0.0)    # ||m_j||^2

        # pair matrix [i, j]: ||m_i - m_j||_F^2 = s_i + s_j (disjoint supports)
        fro = jnp.sqrt(s_c + s_r)                                    # (L, L)
        diff = sigma_dis - fro
        # no clamp: torch.max(norm, 0)[0] on a 0-d tensor is a no-op
        term = jnp.log(diff * diff + 1.0)

        row_i = jax.lax.broadcasted_iota(jnp.int32, (l_pad, l_pad), 0)
        col_j = jax.lax.broadcasted_iota(jnp.int32, (l_pad, l_pad), 1)
        pair_mask = ((row_i < col_j) & (card_c > 0) & (card_r > 0))
        pair_total = jnp.sum(jnp.where(pair_mask, term, 0.0))

        # num_kernels = largest label actually present (card > 0)
        idx = jax.lax.broadcasted_iota(jnp.int32, (l_pad, 1), 0) + 1
        nk = jnp.max(jnp.where(card_c > 0, idx, 0))                  # int32
        nkf = nk.astype(jnp.float32)
        denom = jnp.maximum(nkf * (nkf - 1.0), 1.0)
        loss_b = jnp.where(nk > 1, pair_total / denom, 0.0)

        # write the per-batch tile once (value broadcast; wrapper reads [0,0])
        out_ref[...] = jnp.broadcast_to(loss_b, out_ref.shape).astype(out_ref.dtype)


def _round_up(x, m):
    return ((x + m - 1) // m) * m


def discrimination_loss(pred_similarities, kernel_mask_ndi_labels,
                        sigma_dis: float = 3.0, max_label: int | None = None,
                        chunk: int | None = None, stream_bf16: bool = False):
    """Sum over batch of the per-item discrimination loss (scalar float32).

    Contract: `max_label` must be a static int >= the maximum label value in
    `kernel_mask_ndi_labels`; labels above it are silently excluded (result
    would diverge from the reference). If None, it is computed with a
    device->host sync (slow path, may trigger recompiles per distinct max).

    `chunk=None` auto-sizes the pixel chunk so each grid step streams ~512 KiB
    of predictions (capped at 8192 lanes and at a VMEM-safe per-buffer size for
    v7x). `stream_bf16=True` down-casts f32 predictions to bf16 before the DMA
    (halves the dominant HBM stream on mem-bound v5e/v6e; small accuracy cost).
    """
    pred = jnp.asarray(pred_similarities)
    b, c = pred.shape[:2]

    if stream_bf16:
        pred = pred.astype(jnp.bfloat16)
    elif pred.dtype not in (jnp.float32, jnp.bfloat16):
        pred = pred.astype(jnp.float32)
    pred = pred.reshape(b, c, -1)

    labels = jnp.asarray(kernel_mask_ndi_labels)
    if max_label is None:
        # Slow path (host sync + possible recompilation). Prefer passing it.
        max_label = int(jnp.max(labels))
    max_label = max(int(max_label), 1)
    l_pad = max(8, _round_up(max_label, 8))       # pad labels to sublane mult

    # Shrink the label DMA stream when the static bound allows; clamp negative
    # labels to 0 (background) so the int8 cast can never wrap into 1..L.
    lab_dtype = jnp.int8 if max_label <= 127 else jnp.int32
    labels = jnp.maximum(labels.astype(jnp.int32), 0).astype(lab_dtype)
    labels = labels.reshape(b, 1, -1)

    n = pred.shape[-1]
    itemsize = pred.dtype.itemsize
    n128 = _round_up(n, 128)

    if chunk is None:
        # ~512 KiB of pred per step (amortizes ~0.35 us/step overhead), capped
        # at 8192 lanes (bounds the unrolled group loop) and <=6 MiB per
        # double-buffered pred block (safe inside v7x's 32 MiB scoped VMEM).
        target_tn = (512 * 1024) // max(1, c * itemsize)
        vmem_tn = (6 * 1024 * 1024) // max(1, c * itemsize)
        tn = min(8192, max(target_tn, 2048), vmem_tn)
    else:
        tn = int(chunk)
    tn = max(128, min((tn // 128) * 128, n128))

    n_pad = _round_up(n128, tn)
    nc = n_pad // tn
    if n_pad != n:
        # pad labels with 0 (background) so padded pixels never match a kernel
        pred = jnp.pad(pred, ((0, 0), (0, 0), (0, n_pad - n)))
        labels = jnp.pad(labels, ((0, 0), (0, 0), (0, n_pad - n)))

    aw = max(128, _round_up(c, 128))   # lane width of the per-channel acc

    out = pl.pallas_call(
        functools.partial(_disc_loss_kernel, sigma_dis=float(sigma_dis)),
        out_shape=jax.ShapeDtypeStruct((b, 8, 128), jnp.float32),
        grid_spec=pltpu.PrefetchScalarGridSpec(
            num_scalar_prefetch=0,
            grid=(b, nc),
            in_specs=[
                pl.BlockSpec((1, c, tn), lambda i, j: (i, 0, j)),
                pl.BlockSpec((1, 1, tn), lambda i, j: (i, 0, j)),
            ],
            out_specs=pl.BlockSpec((1, 8, 128), lambda i, j: (i, 0, 0)),
            scratch_shapes=[
                pltpu.VMEM((l_pad, 128), jnp.float32),   # per-label cardinality
                pltpu.VMEM((l_pad, aw), jnp.float32),    # per-label/chan |x|^2
            ],
        ),
        compiler_params=pltpu.CompilerParams(
            # batch axis is independent per item (v7x can split it across TCs);
            # pixel-chunk axis carries the scratch accumulators.
            dimension_semantics=("parallel", "arbitrary")),
    )(pred, labels)

    # only element [b, 0, 0] of each per-batch tile is needed
    return jnp.sum(out[:, 0, 0])


def _reference_loss(pred, labels, sigma=3.0):
    """Pure numpy port of the PyTorch forward (literal semantics)."""
    pred = np.asarray(pred, np.float32)
    labels = np.asarray(labels)
    bsz, c = pred.shape[:2]
    pred = pred.reshape(bsz, c, -1)
    labels = labels.reshape(bsz, -1)
    total = 0.0
    for p, lab in zip(pred, labels):
        nk = int(lab.max())
        if nk <= 1:
            continue
        acc = 0.0
        for i in range(1, nk + 1):
            for j in range(i + 1, nk + 1):
                mi = (lab == i)[None, :]
                mj = (lab == j)[None, :]
                ci, cj = mi.sum(), mj.sum()
                if ci == 0 or cj == 0:
                    continue
                a = p * mi / ci
                bb = p * mj / cj
                fro = np.linalg.norm(a - bb)
                d = sigma - fro                 # literal torch code: no clamp
                acc += np.log(d * d + 1.0)
        total += acc / (nk * (nk - 1))
    return np.float32(total)


if __name__ == "__main__":
    key = jax.random.PRNGKey(0)
    B, C, H, W = 2, 4, 16, 16
    k1, k2, k3, k4 = jax.random.split(key, 4)
    pred = jax.random.normal(k1, (B, C, H, W), dtype=jnp.float32)
    # integer connected-component style labels; 0 = background, kernels = 1..3
    labels = jax.random.randint(k2, (B, H, W), 0, 4).astype(jnp.int32)
    # make item 1 exercise the "num_kernels <= 1" path (contributes 0)
    labels = labels.at[1].set(jnp.minimum(labels[1], 1))

    ref = _reference_loss(np.asarray(pred), np.asarray(labels), sigma=3.0)

    # auto chunk (whole image in one pixel block, 2 lane groups / 2 chains)
    loss_auto = discrimination_loss(pred, labels, sigma_dis=3.0, max_label=8)
    # small chunk -> 2 grid steps, exercises the cross-chunk accumulators
    loss_small = discrimination_loss(pred, labels, sigma_dis=3.0, max_label=8,
                                     chunk=128)
    # bf16 pred stream (mem-bound v5e/v6e option)
    loss_bf16 = discrimination_loss(pred, labels, sigma_dis=3.0, max_label=8,
                                    stream_bf16=True)
    loss_auto, loss_small, loss_bf16 = jax.block_until_ready(
        (loss_auto, loss_small, loss_bf16))

    np.testing.assert_allclose(np.asarray(loss_auto), ref, rtol=1e-4, atol=1e-5)
    np.testing.assert_allclose(np.asarray(loss_small), ref, rtol=1e-4, atol=1e-5)
    np.testing.assert_allclose(np.asarray(loss_bf16), ref, rtol=2e-2, atol=1e-3)

    # second shape: B=1, larger spatial -> 8 lane groups / 4 accumulator chains
    B2, C2, H2, W2 = 1, 4, 32, 32
    pred2 = jax.random.normal(k3, (B2, C2, H2, W2), dtype=jnp.float32)
    labels2 = jax.random.randint(k4, (B2, H2, W2), 0, 6).astype(jnp.int32)
    ref2 = _reference_loss(np.asarray(pred2), np.asarray(labels2), sigma=3.0)
    loss2 = jax.block_until_ready(
        discrimination_loss(pred2, labels2, sigma_dis=3.0, max_label=8))
    np.testing.assert_allclose(np.asarray(loss2), ref2, rtol=1e-4, atol=1e-5)

    print("KERNEL_OK")
</pallas_src>

<mosaic_0001>
module attributes {stable_mosaic.version = 11 : i64} {
  func.func @_disc_loss_kernel(%arg0: i32, %arg1: i32, %arg2: memref<1x4x256xf32, #tpu.memory_space<vmem>>, %arg3: memref<1x1x256xi8, #tpu.memory_space<vmem>>, %arg4: memref<1x8x128xf32, #tpu.memory_space<vmem>>, %arg5: memref<8x128xf32, #tpu.memory_space<vmem>>, %arg6: memref<8x128xf32, #tpu.memory_space<vmem>>) attributes {dimension_semantics = [#tpu.dimension_semantics<parallel>, #tpu.dimension_semantics<arbitrary>], iteration_bounds = array<i64: 2, 1>, scalar_prefetch = 0 : i64, scratch_operands = 2 : i64, tpu.core_type = #tpu.core_type<tc>, window_params = [{transform_indices = @transform_0, window_bounds = array<i64: 1, 4, 256>}, {transform_indices = @transform_1, window_bounds = array<i64: 1, 1, 256>}, {transform_indices = @transform_2, window_bounds = array<i64: 1, 8, 128>}]} {
    %c0_i32 = arith.constant 0 : i32
    %0 = arith.cmpi eq, %arg1, %c0_i32 : i32
    %1 = arith.extui %0 : i1 to i32
    %c0_i32_0 = arith.constant 0 : i32
    %2 = arith.cmpi ne, %1, %c0_i32_0 : i32
    scf.if %2 {
      %cst_26 = arith.constant 0.000000e+00 : f32
      %47 = vector.broadcast %cst_26 : f32 to vector<8x128xf32>
      %c0_27 = arith.constant 0 : index
      %c0_28 = arith.constant 0 : index
      %48 = vector.load %arg5[%c0_27, %c0_28] : memref<8x128xf32, #tpu.memory_space<vmem>>, vector<8x128xf32>
      tpu.vector_store %arg5[%c0_27, %c0_28], %47 {strides = array<i32>} : memref<8x128xf32, #tpu.memory_space<vmem>>, vector<8x128xf32>,
      %cst_29 = arith.constant 0.000000e+00 : f32
      %49 = vector.broadcast %cst_29 : f32 to vector<8x128xf32>
      %c0_30 = arith.constant 0 : index
      %c0_31 = arith.constant 0 : index
      %50 = vector.load %arg6[%c0_30, %c0_31] : memref<8x128xf32, #tpu.memory_space<vmem>>, vector<8x128xf32>
      tpu.vector_store %arg6[%c0_30, %c0_31], %49 {strides = array<i32>} : memref<8x128xf32, #tpu.memory_space<vmem>>, vector<8x128xf32>,
    } else {
    }
    %3 = tpu.iota {dimensions = array<i32: 0>} : vector<8x128xi32>
    %c1_i32 = arith.constant 1 : i32
    %4 = vector.broadcast %c1_i32 : i32 to vector<8x128xi32>
    %5 = arith.addi %3, %4 : vector<8x128xi32>
    %cst = arith.constant 0.000000e+00 : f32
    %6 = vector.broadcast %cst : f32 to vector<8x128xf32>
    %cst_1 = arith.constant 0.000000e+00 : f32
    %7 = vector.broadcast %cst_1 : f32 to vector<8x128xf32>
    %cst_2 = arith.constant 0.000000e+00 : f32
    %8 = vector.broadcast %cst_2 : f32 to vector<8x4xf32>
    %cst_3 = arith.constant 0.000000e+00 : f32
    %9 = vector.broadcast %cst_3 : f32 to vector<8x4xf32>
    %c0 = arith.constant 0 : index
    %c0_4 = arith.constant 0 : index
    %c0_5 = arith.constant 0 : index
    %10 = vector.load %arg2[%c0, %c0_4, %c0_5] : memref<1x4x256xf32, #tpu.memory_space<vmem>>, vector<1x4x128xf32>
    %11 = vector.shape_cast %10 : vector<1x4x128xf32> to vector<4x128xf32>
    %c0_6 = arith.constant 0 : index
    %c0_7 = arith.constant 0 : index
    %c0_8 = arith.constant 0 : index
    %12 = vector.load %arg3[%c0_6, %c0_7, %c0_8] : memref<1x1x256xi8, #tpu.memory_space<vmem>>, vector<1x1x128xi8>
    %13 = vector.shape_cast %12 : vector<1x1x128xi8> to vector<1x128xi8>
    %14 = arith.extsi %13 : vector<1x128xi8> to vector<1x128xi32>
    %15 = vector.broadcast %14 : vector<1x128xi32> to vector<8x128xi32>
    %16 = arith.cmpi eq, %5, %15 : vector<8x128xi32>
    %17 = arith.extui %16 : vector<8x128xi1> to vector<8x128xi32>
    %18 = arith.sitofp %17 : vector<8x128xi32> to vector<8x128xf32>
    %19 = arith.mulf %11, %11 : vector<4x128xf32>
    %cst_9 = arith.constant dense<0.000000e+00> : vector<8x4xf32>
    %20 = tpu.matmul %18, %19, %cst_9 {dimension_numbers = #tpu.dot_dimension_numbers<[1], [1], [0], [0], [0, 0, 1, 0], [], []>} : vector<8x128xf32>, vector<4x128xf32>, vector<8x4xf32> -> vector<8x4xf32>
    %21 = arith.addf %6, %18 : vector<8x128xf32>
    %22 = arith.addf %8, %20 : vector<8x4xf32>
    %c0_10 = arith.constant 0 : index
    %c0_11 = arith.constant 0 : index
    %c128 = arith.constant 128 : index
    %23 = vector.load %arg2[%c0_10, %c0_11, %c128] : memref<1x4x256xf32, #tpu.memory_space<vmem>>, vector<1x4x128xf32>
    %24 = vector.shape_cast %23 : vector<1x4x128xf32> to vector<4x128xf32>
    %c0_12 = arith.constant 0 : index
    %c0_13 = arith.constant 0 : index
    %c128_14 = arith.constant 128 : index
    %25 = vector.load %arg3[%c0_12, %c0_13, %c128_14] : memref<1x1x256xi8, #tpu.memory_space<vmem>>, vector<1x1x128xi8>
    %26 = vector.shape_cast %25 : vector<1x1x128xi8> to vector<1x128xi8>
    %27 = arith.extsi %26 : vector<1x128xi8> to vector<1x128xi32>
    %28 = vector.broadcast %27 : vector<1x128xi32> to vector<8x128xi32>
    %29 = arith.cmpi eq, %5, %28 : vector<8x128xi32>
    %30 = arith.extui %29 : vector<8x128xi1> to vector<8x128xi32>
    %31 = arith.sitofp %30 : vector<8x128xi32> to vector<8x128xf32>
    %32 = arith.mulf %24, %24 : vector<4x128xf32>
    %cst_15 = arith.constant dense<0.000000e+00> : vector<8x4xf32>
    %33 = tpu.matmul %31, %32, %cst_15 {dimension_numbers = #tpu.dot_dimension_numbers<[1], [1], [0], [0], [0, 0, 1, 0], [], []>} : vector<8x128xf32>, vector<4x128xf32>, vector<8x4xf32> -> vector<8x4xf32>
    %34 = arith.addf %7, %31 : vector<8x128xf32>
    %35 = arith.addf %9, %33 : vector<8x4xf32>
    %36 = arith.addf %21, %34 : vector<8x128xf32>
    %37 = arith.addf %22, %35 : vector<8x4xf32>
    %c0_16 = arith.constant 0 : index
    %c0_17 = arith.constant 0 : index
    %38 = vector.load %arg5[%c0_16, %c0_17] : memref<8x128xf32, #tpu.memory_space<vmem>>, vector<8x128xf32>
    %39 = arith.addf %38, %36 : vector<8x128xf32>
    %c0_18 = arith.constant 0 : index
    %c0_19 = arith.constant 0 : index
    %40 = vector.load %arg5[%c0_18, %c0_19] : memref<8x128xf32, #tpu.memory_space<vmem>>, vector<8x128xf32>
    tpu.vector_store %arg5[%c0_18, %c0_19], %39 {strides = array<i32>} : memref<8x128xf32, #tpu.memory_space<vmem>>, vector<8x128xf32>,
    %c0_20 = arith.constant 0 : index
    %c0_21 = arith.constant 0 : index
    %41 = vector.load %arg6[%c0_20, %c0_21] : memref<8x128xf32, #tpu.memory_space<vmem>>, vector<8x4xf32>
    %42 = arith.addf %41, %37 : vector<8x4xf32>
    %c0_22 = arith.constant 0 : index
    %c0_23 = arith.constant 0 : index
    %43 = vector.load %arg6[%c0_22, %c0_23] : memref<8x128xf32, #tpu.memory_space<vmem>>, vector<8x4xf32>
    tpu.vector_store %arg6[%c0_22, %c0_23], %42 {strides = array<i32>} : memref<8x128xf32, #tpu.memory_space<vmem>>, vector<8x4xf32>,
    %c0_i32_24 = arith.constant 0 : i32
    %44 = arith.cmpi eq, %arg1, %c0_i32_24 : i32
    %45 = arith.extui %44 : i1 to i32
    %c0_i32_25 = arith.constant 0 : i32
    %46 = arith.cmpi ne, %45, %c0_i32_25 : i32
    scf.if %46 {
      %c0_26 = arith.constant 0 : index
      %c0_27 = arith.constant 0 : index
      %47 = vector.load %arg5[%c0_26, %c0_27] : memref<8x128xf32, #tpu.memory_space<vmem>>, vector<8x128xf32>
      %c0_28 = arith.constant 0 : index
      %c0_29 = arith.constant 0 : index
      %48 = vector.load %arg6[%c0_28, %c0_29] : memref<8x128xf32, #tpu.memory_space<vmem>>, vector<8x128xf32>
      %cst_30 = arith.constant dense<0.000000e+00> : vector<8xf32>
      %49 = vector.multi_reduction <add>, %47, %cst_30 [1] : vector<8x128xf32> to vector<8xf32>
      %50 = vector.shape_cast %49 : vector<8xf32> to vector<8x1xf32>
      %cst_31 = arith.constant dense<0.000000e+00> : vector<8xf32>
      %51 = vector.multi_reduction <add>, %48, %cst_31 [1] : vector<8x128xf32> to vector<8xf32>
      %52 = vector.shape_cast %51 : vector<8xf32> to vector<8x1xf32>
      %cst_32 = arith.constant 0.000000e+00 : f32
      %53 = vector.broadcast %cst_32 : f32 to vector<8x1xf32>
      %54 = arith.cmpf ogt, %50, %53 : vector<8x1xf32>
      %55 = arith.mulf %50, %50 : vector<8x1xf32>
      %56 = arith.divf %52, %55 : vector<8x1xf32>
      %cst_33 = arith.constant 0.000000e+00 : f32
      %57 = vector.broadcast %cst_33 : f32 to vector<8x1xf32>
      %58 = arith.select %54, %56, %57 : vector<8x1xi1>, vector<8x1xf32>
      %cst_34 = arith.constant 1.000000e+00 : f32
      %59 = vector.broadcast %cst_34 : f32 to vector<8x128xf32>
      %cst_35 = arith.constant 1.000000e+00 : f32
      %60 = vector.broadcast %cst_35 : f32 to vector<8x128xf32>
      %cst_36 = arith.constant dense<0.000000e+00> : vector<8x8xf32>
      %61 = tpu.matmul %59, %47, %cst_36 {dimension_numbers = #tpu.dot_dimension_numbers<[1], [1], [0], [0], [0, 0, 1, 0], [], []>} : vector<8x128xf32>, vector<8x128xf32>, vector<8x8xf32> -> vector<8x8xf32>
      %cst_37 = arith.constant dense<0.000000e+00> : vector<8x8xf32>
      %62 = tpu.matmul %60, %48, %cst_37 {dimension_numbers = #tpu.dot_dimension_numbers<[1], [1], [0], [0], [0, 0, 1, 0], [], []>} : vector<8x128xf32>, vector<8x128xf32>, vector<8x8xf32> -> vector<8x8xf32>
      %cst_38 = arith.constant 0.000000e+00 : f32
      %63 = vector.broadcast %cst_38 : f32 to vector<8x8xf32>
      %64 = arith.cmpf ogt, %61, %63 : vector<8x8xf32>
      %65 = arith.mulf %61, %61 : vector<8x8xf32>
      %66 = arith.divf %62, %65 : vector<8x8xf32>
      %cst_39 = arith.constant 0.000000e+00 : f32
      %67 = vector.broadcast %cst_39 : f32 to vector<8x8xf32>
      %68 = arith.select %64, %66, %67 : vector<8x8xi1>, vector<8x8xf32>
      %69 = vector.broadcast %58 : vector<8x1xf32> to vector<8x8xf32>
      %70 = arith.addf %69, %68 : vector<8x8xf32>
      %71 = math.sqrt %70 : vector<8x8xf32>
      %cst_40 = arith.constant 3.000000e+00 : f32
      %72 = vector.broadcast %cst_40 : f32 to vector<8x8xf32>
      %73 = arith.subf %72, %71 : vector<8x8xf32>
      %74 = arith.mulf %73, %73 : vector<8x8xf32>
      %cst_41 = arith.constant 1.000000e+00 : f32
      %75 = vector.broadcast %cst_41 : f32 to vector<8x8xf32>
      %76 = arith.addf %74, %75 : vector<8x8xf32>
      %77 = math.log %76 : vector<8x8xf32>
      %78 = tpu.iota {dimensions = array<i32: 0>} : vector<8x8xi32>
      %79 = tpu.iota {dimensions = array<i32: 1>} : vector<8x8xi32>
      %80 = arith.cmpi slt, %78, %79 : vector<8x8xi32>
      %cst_42 = arith.constant 0.000000e+00 : f32
      %81 = vector.broadcast %cst_42 : f32 to vector<8x1xf32>
      %82 = arith.cmpf ogt, %50, %81 : vector<8x1xf32>
      %83 = vector.broadcast %82 : vector<8x1xi1> to vector<8x8xi1>
      %84 = arith.andi %80, %83 : vector<8x8xi1>
      %cst_43 = arith.constant 0.000000e+00 : f32
      %85 = vector.broadcast %cst_43 : f32 to vector<8x8xf32>
      %86 = arith.cmpf ogt, %61, %85 : vector<8x8xf32>
      %87 = arith.andi %84, %86 : vector<8x8xi1>
      %cst_44 = arith.constant 0.000000e+00 : f32
      %88 = vector.broadcast %cst_44 : f32 to vector<8x8xf32>
      %89 = arith.select %87, %77, %88 : vector<8x8xi1>, vector<8x8xf32>
      %90 = vector.shape_cast %89 : vector<8x8xf32> to vector<1x8x8xf32>
      %cst_45 = arith.constant dense<0.000000e+00> : vector<1xf32>
      %91 = vector.multi_reduction <add>, %90, %cst_45 [1, 2] : vector<1x8x8xf32> to vector<1xf32>
      %92 = vector.shape_cast %91 : vector<1xf32> to vector<1x1x1xf32>
      %93 = vector.extract %92[0, 0, 0] : f32 from vector<1x1x1xf32>
      %94 = tpu.iota {dimensions = array<i32: 0>} : vector<8x1xi32>
      %c1_i32_46 = arith.constant 1 : i32
      %95 = vector.broadcast %c1_i32_46 : i32 to vector<8x1xi32>
      %96 = arith.addi %94, %95 : vector<8x1xi32>
      %cst_47 = arith.constant 0.000000e+00 : f32
      %97 = vector.broadcast %cst_47 : f32 to vector<8x1xf32>
      %98 = arith.cmpf ogt, %50, %97 : vector<8x1xf32>
      %c0_i32_48 = arith.constant 0 : i32
      %99 = vector.broadcast %c0_i32_48 : i32 to vector<8x1xi32>
      %100 = arith.select %98, %96, %99 : vector<8x1xi1>, vector<8x1xi32>
      %101 = vector.shape_cast %100 : vector<8x1xi32> to vector<1x8x1xi32>
      %cst_49 = arith.constant dense<-2147483648> : vector<1xi32>
      %102 = vector.multi_reduction <maxsi>, %101, %cst_49 [1, 2] : vector<1x8x1xi32> to vector<1xi32>
      %103 = vector.shape_cast %102 : vector<1xi32> to vector<1x1x1xi32>
      %104 = vector.extract %103[0, 0, 0] : i32 from vector<1x1x1xi32>
      %105 = arith.sitofp %104 : i32 to f32
      %cst_50 = arith.constant 1.000000e+00 : f32
      %106 = arith.subf %105, %cst_50 : f32
      %107 = arith.mulf %105, %106 : f32
      %cst_51 = arith.constant 1.000000e+00 : f32
      %108 = arith.maximumf %107, %cst_51 : f32
      %c1_i32_52 = arith.constant 1 : i32
      %109 = arith.cmpi sgt, %104, %c1_i32_52 : i32
      %110 = arith.divf %93, %108 : f32
      %cst_53 = arith.constant 0.000000e+00 : f32
      %111 = arith.select %109, %110, %cst_53 : f32
      %112 = vector.broadcast %111 : f32 to vector<1x8x128xf32>
      %c0_54 = arith.constant 0 : index
      %c0_55 = arith.constant 0 : index
      %c0_56 = arith.constant 0 : index
      %113 = vector.load %arg4[%c0_54, %c0_55, %c0_56] : memref<1x8x128xf32, #tpu.memory_space<vmem>>, vector<1x8x128xf32>
      tpu.vector_store %arg4[%c0_54, %c0_55, %c0_56], %112 {strides = array<i32>} : memref<1x8x128xf32, #tpu.memory_space<vmem>>, vector<1x8x128xf32>,
    } else {
    }
    return
  }
  func.func @transform_0(%arg0: i32, %arg1: i32) -> (i32, i32, i32) {
    %c0_i32 = arith.constant 0 : i32
    %c0_i32_0 = arith.constant 0 : i32
    return %arg0, %c0_i32, %arg1 : i32, i32, i32
  }
  func.func @transform_1(%arg0: i32, %arg1: i32) -> (i32, i32, i32) {
    %c0_i32 = arith.constant 0 : i32
    %c0_i32_0 = arith.constant 0 : i32
    return %arg0, %c0_i32, %arg1 : i32, i32, i32
  }
  func.func @transform_2(%arg0: i32, %arg1: i32) -> (i32, i32, i32) {
    %c0_i32 = arith.constant 0 : i32
    %c0_i32_0 = arith.constant 0 : i32
    %c0_i32_1 = arith.constant 0 : i32
    return %arg0, %c0_i32, %c0_i32_0 : i32, i32, i32
  }
}

</mosaic_0001>

<llo_original>
// kernel: tpu_custom_call.1
$region0: #{tpu_custom_call.1}
  #allocation0 [shape = 'u32[]', space=smem, size = 0x4, offset = 0x4, fixed_abs, tag = 'smem constant byte address 0x4 - core index']
  #allocation1 [shape = 'u32[144,128]{1,0:T(1,128)}', space=vmem, size = 0x12000, scoped, tag = 'internal scratch']
  #allocation2 [shape = 'f32[8,128]{1,0:T(8,128)}', space=vmem, size = 0x1000, scoped, tag = 'scratch operand']
  #allocation3 [shape = 'f32[8,128]{1,0:T(8,128)}', space=vmem, size = 0x1000, scoped, tag = 'scratch operand']
  %s0 = inlined_call_operand.hbm [shape: f32[2,4,256], index: 0, kind: input, shape index: {}]
  %s1 = inlined_call_operand.vmem [shape: s8[2,1,256], index: 1, kind: input, shape index: {}]
  %s2 = inlined_call_operand.hbm [shape: f32[2,8,128], index: 2, kind: output, shape index: {}]
  %s3 = sld [smem:[#allocation0]]
  $region53: #{tpu_custom_call.1} parent=0
    _
  %s5 = ssub.s32 1, %s3
  %s6 = scalar_select 0, %s5, %s3
  $region1: #{tpu_custom_call.1} parent=0
    #allocation4 [shape = 'u8[8192]{0}', space=vmem, size = 0x2000, scoped, tag = 'input window, operand 0']
    #allocation5 [shape = 's32[2]{0}', space=sflag, size = 0x8, scoped, tag = 'scoped memory for tpu_custom_call.1']
    #allocation6 [shape = 's32[2]{0}', space=sflag, size = 0x8, scoped, tag = 'scoped memory for tpu_custom_call.1']
    #allocation7 [shape = 'u8[8192]{0}', space=vmem, size = 0x2000, scoped, tag = 'output window, operand 0']
    %7 = vsyncpa [#allocation5], 0
    %s8 = scalar_lea.sflag [#allocation5], 1
    %9 = vsyncpa %s8, 0
    %10 = vsyncpa [#allocation6], 0
    %s11 = scalar_lea.sflag [#allocation6], 1
    %12 = vsyncpa %s11, 0
    loop: start=0, step=1, limit=4
    $region2: #{tpu_custom_call.1} parent=1 // loop_pre_header
      _
    $region3: #{tpu_custom_call.1} parent=1 // loop_header
      %s14 = sphi 0, %s18
      %p15 = scmp.ge.s32.totalorder %s14, 4
      %s21 = sphi 0, %s33
      %s22 = sphi 0, %s29
      %s23 = sphi 0, %s21
      %s24 = sphi 0, %s22
      %s25 = sphi 0, %s23
      %s26 = sphi 0, %s24
      %s38 = sphi 0, %s40
      %s41 = sphi 0, %s38
      %s42 = sphi 0, %s41
      %s58 = sphi 0, %s42
      %s66 = sphi 0, %s68
      %s69 = sphi 0, %s66
      %s70 = sphi 0, %s69
      %s86 = sphi 0, %s70
      %s92 = sphi 0, %s94
      %s95 = sphi 0, %s92
      %s96 = sphi 0, %s95
      %s112 = sphi 0, %s96
    $region4: #{tpu_custom_call.1} parent=1 // loop_header_branch
      %17 = sbr.rel (%p15) target = $region8
    $region5: #{tpu_custom_call.1} parent=1 // loop_body
      %s19 = ssub.s32 %s14, 1
      %s20 = ssub.s32 %s14, 2
      %s27 = sadd.s32 1, %s22
      %p28 = scmp.ge.s32.totalorder %s27, 1
      %s29 = scalar_select %p28, 0, %s27
      %s30 = sadd.s32 1, %s21
      %s31 = scalar_select %p28, %s30, %s21
      %p32 = scmp.ge.s32.totalorder %s31, 2
      %s33 = scalar_select %p32, 0, %s31
      %s34 = ssub.s32 %s21, %s33
      %s35 = ssub.s32 %s22, %s29
      %s36 = sor.u32 %s34, %s35
      %p37 = scmp.eq.s32.totalorder %s36, 0
      %s39 = sadd.s32 %s38, 1
      %s40 = scalar_select %p37, %s38, %s39
      %p43 = pneg %p37
      %p44 = scmp.eq.s32.totalorder %s14, 1
      %p45 = por %p43, %p44
      %p46 = scmp.ne.s32.totalorder %s38, %s41
      %p47 = scmp.eq.s32.totalorder %s14, 0
      %p48 = por %p46, %p47
      %p49 = scmp.ne.s32.totalorder %s38, %s41
      %p50 = scmp.eq.s32.totalorder %s19, 1
      %p51 = por %p49, %p50
      %p52 = scmp.ne.s32.totalorder %s41, %s42
      %p53 = scmp.eq.s32.totalorder %s19, 0
      %p54 = por %p52, %p53
      %p55 = scmp.ne.s32.totalorder %s41, %s42
      %p56 = scmp.eq.s32.totalorder %s20, 1
      %p57 = por %p55, %p56
      %p59 = scmp.ne.s32.totalorder %s42, %s58
      %p60 = scmp.eq.s32.totalorder %s20, 0
      %p61 = por %p59, %p60
      %s62 = ssub.s32 %s21, %s33
      %s63 = ssub.s32 %s22, %s29
      %s64 = sor.u32 %s62, %s63
      %p65 = scmp.eq.s32.totalorder %s64, 0
      %s67 = sadd.s32 %s66, 1
      %s68 = scalar_select %p65, %s66, %s67
      %p71 = pneg %p65
      %p72 = scmp.eq.s32.totalorder %s14, 1
      %p73 = por %p71, %p72
      %p74 = scmp.ne.s32.totalorder %s66, %s69
      %p75 = scmp.eq.s32.totalorder %s14, 0
      %p76 = por %p74, %p75
      %p77 = scmp.ne.s32.totalorder %s66, %s69
      %p78 = scmp.eq.s32.totalorder %s19, 1
      %p79 = por %p77, %p78
      %p80 = scmp.ne.s32.totalorder %s69, %s70
      %p81 = scmp.eq.s32.totalorder %s19, 0
      %p82 = por %p80, %p81
      %p83 = scmp.ne.s32.totalorder %s69, %s70
      %p84 = scmp.eq.s32.totalorder %s20, 1
      %p85 = por %p83, %p84
      %p87 = scmp.ne.s32.totalorder %s70, %s86
      %p88 = scmp.eq.s32.totalorder %s20, 0
      %p89 = por %p87, %p88
      %s90 = ssub.s32 %s21, %s33
      %p91 = scmp.eq.s32.totalorder %s90, 0
      %s93 = sadd.s32 %s92, 1
      %s94 = scalar_select %p91, %s92, %s93
      %p97 = pneg %p91
      %p98 = scmp.eq.s32.totalorder %s14, 1
      %p99 = por %p97, %p98
      %p100 = scmp.ne.s32.totalorder %s92, %s95
      %p101 = scmp.eq.s32.totalorder %s14, 0
      %p102 = por %p100, %p101
      %p103 = scmp.ne.s32.totalorder %s92, %s95
      %p104 = scmp.eq.s32.totalorder %s19, 1
      %p105 = por %p103, %p104
      %p106 = scmp.ne.s32.totalorder %s95, %s96
      %p107 = scmp.eq.s32.totalorder %s19, 0
      %p108 = por %p106, %p107
      %p109 = scmp.ne.s32.totalorder %s95, %s96
      %p110 = scmp.eq.s32.totalorder %s20, 1
      %p111 = por %p109, %p110
      %p113 = scmp.ne.s32.totalorder %s96, %s112
      %p114 = scmp.eq.s32.totalorder %s20, 0
      %p115 = por %p113, %p114
      %p116 = scmp.le.s32.totalorder 1, %s14
      %p117 = scmp.lt.s32.totalorder %s14, 3
      %p118 = pnand %p116, %p117
      %p119 = pneg %p118
      // Predicated region
      $region9: #{tpu_custom_call.1} parent=5 // pred_check
        _
      $region10: #{tpu_custom_call.1} parent=5 // pred_check_branch
        %121 = sbr.rel (%p118) target = $region12
      $region11: #{tpu_custom_call.1} parent=5 // pred_region
        %s122 = ssub.s32 %s14, 1
      $region12: #{tpu_custom_call.1} parent=5 // pred_fallthru
        _
      %p123 = scmp.lt.s32.totalorder %s14, 2
      // Predicated region
      $region13: #{tpu_custom_call.1} parent=5 // pred_check
        %p124 = pneg %p123
      $region14: #{tpu_custom_call.1} parent=5 // pred_check_branch
        %126 = sbr.rel (%p124) target = $region16
      $region15: #{tpu_custom_call.1} parent=5 // pred_region
        // Predicated region
        $region17: #{tpu_custom_call.1} parent=15 // pred_check
          %p127 = pneg %p48
        $region18: #{tpu_custom_call.1} parent=15 // pred_check_branch
          %129 = sbr.rel (%p127) target = $region20
        $region19: #{tpu_custom_call.1} parent=15 // pred_region
          %s130 = sand.u32 %s38, 1
          %s131 = scalar_lea.sflag [#allocation5], %s130
          %s132 = sand.u32 %s38, 1
          %s133 = smul.addr %s132, 8
          %s134 = scalar_lea.vmem [#allocation4], %s133
          %s135 = smul.u32 2, %s22
          %s137 = ssub.s32 128, 128
          %138 = vsyncadd %s131, %s137
          %s139 = smul.addr %s21, 2
          %s140 = sadd.s32 %s135, %s139
          %s141 = smul.addr %s140, 64
          %s142 = scalar_lea.hbm %s0, %s141
          %s144 = sshll.u32 %s134, 4
          %s145 = int_to_ptr.vmem [resolvable:$true] %s144
          %147 = dma.hbm_to_vmem [thread:$0]  %s142, 128, %s145, %s131
        $region20: #{tpu_custom_call.1} parent=15 // pred_fallthru
          _
        // Predicated region
        $region21: #{tpu_custom_call.1} parent=15 // pred_check
          %p148 = pneg %p76
        $region22: #{tpu_custom_call.1} parent=15 // pred_check_branch
          %150 = sbr.rel (%p148) target = $region24
        $region23: #{tpu_custom_call.1} parent=15 // pred_region
          %s151 = smul.u32 2, %s22
          %p152 = scmp.lt.s32.totalorder %s21, 1
          %s153 = scalar_select %p152, %s21, 1
          %p154 = scmp.lt.s32.totalorder %s151, 1
          %s155 = scalar_select %p154, %s151, 1
          %s156 = smul.addr %s153, 2
          %s157 = sadd.s32 %s155, %s156
          %s158 = scalar_lea.vmem %s1, %s157
          %s159 = smul.u32 2, %s22
        $region24: #{tpu_custom_call.1} parent=15 // pred_fallthru
          _
      $region16: #{tpu_custom_call.1} parent=5 // pred_fallthru
        _
      %p160 = scmp.le.s32.totalorder 1, %s14
      %p161 = scmp.lt.s32.totalorder %s14, 3
      %p162 = pnand %p160, %p161
      %p163 = pneg %p162
      // Predicated region
      $region25: #{tpu_custom_call.1} parent=5 // pred_check
        _
      $region26: #{tpu_custom_call.1} parent=5 // pred_check_branch
        %165 = sbr.rel (%p162) target = $region28
      $region27: #{tpu_custom_call.1} parent=5 // pred_region
        %s166 = ssub.s32 %s14, 1
        %s167 = sand.u32 %s41, 1
        %s168 = scalar_lea.sflag [#allocation5], %s167
        %s169 = sand.u32 %s41, 1
        %s170 = smul.addr %s169, 8
        %s171 = scalar_lea.vmem [#allocation4], %s170
        // Predicated region
        $region29: #{tpu_custom_call.1} parent=27 // pred_check
          %p172 = pneg %p54
        $region30: #{tpu_custom_call.1} parent=27 // pred_check_branch
          %174 = sbr.rel (%p172) target = $region32
        $region31: #{tpu_custom_call.1} parent=27 // pred_region
          %175 = dma.done %s168, 128
        $region32: #{tpu_custom_call.1} parent=27 // pred_fallthru
          _
        %s176 = sand.u32 %s41, 1
        %s177 = scalar_lea.sflag [#allocation5], %s176
        %s178 = sand.u32 %s41, 1
        %s179 = smul.addr %s178, 8
        %s180 = scalar_lea.vmem [#allocation4], %s179
        %p181 = pneg %p54
        %p182 = pneg %p51
        %s183 = smul.u32 2, %s24
        %p184 = scmp.lt.s32.totalorder %s23, 1
        %s185 = scalar_select %p184, %s23, 1
        %p186 = scmp.lt.s32.totalorder %s183, 1
        %s187 = scalar_select %p186, %s183, 1
        %s188 = smul.addr %s185, 2
        %s189 = sadd.s32 %s187, %s188
        %s190 = scalar_lea.vmem %s1, %s189
        %p191 = pneg %p82
        %p192 = pneg %p79
        %p193 = pneg %p108
        %p194 = pneg %p105
        %s195 = sand.u32 %s95, 1
        %s196 = scalar_lea.sflag [#allocation6], %s195
        %s197 = sand.u32 %s95, 1
        %s198 = smul.addr %s197, 8
        %s199 = scalar_lea.vmem [#allocation7], %s198
        %s200 = smul.u32 2, %s24
        %s201 = smul.u32 2, %s24
        %p202 = scmp.lt.s32.totalorder %s23, 1
        %s203 = scalar_select %p202, %s23, 1
        %p204 = scmp.lt.s32.totalorder %s201, 1
        %s205 = scalar_select %p204, %s201, 1
        %s206 = smul.addr %s203, 2
        %s207 = sadd.s32 %s205, %s206
        %s208 = scalar_lea.vmem %s1, %s207
        %s209 = smul.u32 2, %s24
        %p210 = scmp.eq.s32.totalorder %s24, 0
        // Predicated region
        $region33: #{tpu_custom_call.1} parent=27 // pred_check
          %p211 = pneg %p210
        $region34: #{tpu_custom_call.1} parent=27 // pred_check_branch
          %213 = sbr.rel (%p211) target = $region36
        $region35: #{tpu_custom_call.1} parent=27 // pred_region
          %214 = vst [vmem:[#allocation2] sm:$0xff] 0.0
          %215 = vst [vmem:[#allocation3] sm:$0xff] 0.0
        $region36: #{tpu_custom_call.1} parent=27 // pred_fallthru
          _
        %v216 = vlaneseq
        %v217 = vshrl.u32 %v216, 7
        %v218 = vadd.s32 %v217, 1
        %v219 = vld [vmem:[%s171] sm:$0xf]
        %v220 = vld [vmem:[%s208] sm:$0x1]
        %v221 = vunpack.c.0.s8 %v220
        %v222 = vlaneseq
        %v223 = vshrl.u32 %v222, 7
        %v224 = vsub.s32 0, %v223
        %v225 = vrot.slane %v221, %v224
        %vm226 = vcmp.eq.s32.totalorder %v218, %v225
        %v227 = vsel %vm226, 1, 0
        %v228 = vcvt.s32.f32 %v227
        %v229 = vmul.f32 %v219, %v219
        %v230 = vadd.f32 %v228, 0.0
        %v231 = vld [vmem:[%s171 + $0x4] sm:$0xf]
        %v232 = vld [vmem:[%s208 + $0x1] sm:$0x1]
        %v233 = vunpack.c.0.s8 %v232
        %v234 = vlaneseq
        %v235 = vshrl.u32 %v234, 7
        %v236 = vsub.s32 0, %v235
        %v237 = vrot.slane %v233, %v236
        %vm238 = vcmp.eq.s32.totalorder %v218, %v237
        %v239 = vsel %vm238, 1, 0
        %v240 = vcvt.s32.f32 %v239
        %v241 = vmul.f32 %v231, %v231
        %v242 = vadd.f32 %v240, 0.0
        %243 = vmatprep.subr.mxu0 0.0
        %244 = vmatpush1.xpose.msra.mxu0 %v241
        %245 = vmatprep.subr.mxu0 0.0
        %246 = vmatpush1.xpose.msra.mxu0 0.0
        %247 = vmatprep.subr.mxu0 0.0
        %248 = vmatpush1.xpose.msra.mxu0 0.0
        %249 = vmatprep.subr.mxu0 0.0
        %250 = vmatpush1.xpose.msra.mxu0 0.0
        %251 = vmatprep.subr.mxu0 0.0
        %252 = vmatpush1.xpose.msra.mxu0 0.0
        %253 = vmatprep.subr.mxu0 0.0
        %254 = vmatpush1.xpose.msra.mxu0 0.0
        %255 = vmatprep.subr.mxu0 0.0
        %256 = vmatpush1.xpose.msra.mxu0 0.0
        %257 = vmatprep.subr.mxu0 0.0
        %258 = vmatpush1.xpose.msra.mxu0 0.0
        %259 = vmatprep.subr.mxu0 0.0
        %260 = vmatpush1.xpose.msra.mxu0 0.0
        %261 = vmatprep.subr.mxu0 0.0
        %262 = vmatpush1.xpose.msra.mxu0 0.0
        %263 = vmatprep.subr.mxu0 0.0
        %264 = vmatpush1.xpose.msra.mxu0 0.0
        %265 = vmatprep.subr.mxu0 0.0
        %266 = vmatpush1.xpose.msra.mxu0 0.0
        %267 = vmatprep.subr.mxu0 0.0
        %268 = vmatpush1.xpose.msra.mxu0 0.0
        %269 = vmatprep.subr.mxu0 0.0
        %270 = vmatpush1.xpose.msra.mxu0 0.0
        %271 = vmatprep.subr.mxu0 0.0
        %272 = vmatpush1.xpose.msra.mxu0 0.0
        %273 = vmatprep.subr.mxu0 0.0
        %274 = vmatpush1.xpose.msra.mxu0 0.0
        %275 = vmatprep.subr.mxu0 0.0
        %276 = vmatpush1.xpose.msra.mxu0 0.0
        %277 = vmatprep.subr.mxu0 0.0
        %278 = vmatpush1.xpose.msra.mxu0 0.0
        %279 = vmatprep.subr.mxu0 0.0
        %280 = vmatpush1.xpose.msra.mxu0 0.0
        %281 = vmatprep.subr.mxu0 0.0
        %282 = vmatpush1.xpose.msra.mxu0 0.0
        %283 = vmatprep.subr.mxu0 0.0
        %284 = vmatpush1.xpose.msra.mxu0 0.0
        %285 = vmatprep.subr.mxu0 0.0
        %286 = vmatpush1.xpose.msra.mxu0 0.0
        %287 = vmatprep.subr.mxu0 0.0
        %288 = vmatpush1.xpose.msra.mxu0 0.0
        %289 = vmatprep.subr.mxu0 0.0
        %290 = vmatpush1.xpose.msra.mxu0 0.0
        %291 = vmatprep.subr.mxu0 0.0
        %292 = vmatpush1.xpose.msra.mxu0 0.0
        %293 = vmatprep.subr.mxu0 0.0
        %294 = vmatpush1.xpose.msra.mxu0 0.0
        %295 = vmatprep.subr.mxu0 0.0
        %296 = vmatpush1.xpose.msra.mxu0 0.0
        %297 = vmatprep.subr.mxu0 0.0
        %298 = vmatpush1.xpose.msra.mxu0 0.0
        %299 = vmatprep.subr.mxu0 0.0
        %300 = vmatpush1.xpose.msra.mxu0 0.0
        %301 = vmatprep.subr.mxu0 0.0
        %302 = vmatpush1.xpose.msra.mxu0 0.0
        %303 = vmatprep.subr.mxu0 0.0
        %304 = vmatpush1.xpose.msra.mxu0 0.0
        %305 = vmatprep.subr.mxu0 0.0
        %306 = vmatpush1.xpose.msra.mxu0 0.0
        %307 = vmatprep.mubr.f32.mxu0 0.0
        %308 = vmatmul.mubr.f32.gmra.mrb[0].mxu0 %v240
        %v309 = vpop.f32.mrb[0].mxu0
        %v310 = vadd.f32 0.0, %v309
        %v311 = vpop.f32.mrb[0].mxu0
        %312 = vdwg.mxu0
        %v313 = vadd.f32 %v230, %v242
        %314 = vmatprep.subr.mxu0 0.0
        %315 = vmatpush1.xpose.msra.mxu0 %v229
        %316 = vmatprep.subr.mxu0 0.0
        %317 = vmatpush1.xpose.msra.mxu0 0.0
        %318 = vmatprep.subr.mxu0 0.0
        %319 = vmatpush1.xpose.msra.mxu0 0.0
        %320 = vmatprep.subr.mxu0 0.0
        %321 = vmatpush1.xpose.msra.mxu0 0.0
        %322 = vmatprep.subr.mxu0 0.0
        %323 = vmatpush1.xpose.msra.mxu0 0.0
        %324 = vmatprep.subr.mxu0 0.0
        %325 = vmatpush1.xpose.msra.mxu0 0.0
        %326 = vmatprep.subr.mxu0 0.0
        %327 = vmatpush1.xpose.msra.mxu0 0.0
        %328 = vmatprep.subr.mxu0 0.0
        %329 = vmatpush1.xpose.msra.mxu0 0.0
        %330 = vmatprep.subr.mxu0 0.0
        %331 = vmatpush1.xpose.msra.mxu0 0.0
        %332 = vmatprep.subr.mxu0 0.0
        %333 = vmatpush1.xpose.msra.mxu0 0.0
        %334 = vmatprep.subr.mxu0 0.0
        %335 = vmatpush1.xpose.msra.mxu0 0.0
        %336 = vmatprep.subr.mxu0 0.0
        %337 = vmatpush1.xpose.msra.mxu0 0.0
        %338 = vmatprep.subr.mxu0 0.0
        %339 = vmatpush1.xpose.msra.mxu0 0.0
        %340 = vmatprep.subr.mxu0 0.0
        %341 = vmatpush1.xpose.msra.mxu0 0.0
        %342 = vmatprep.subr.mxu0 0.0
        %343 = vmatpush1.xpose.msra.mxu0 0.0
        %344 = vmatprep.subr.mxu0 0.0
        %345 = vmatpush1.xpose.msra.mxu0 0.0
        %346 = vmatprep.subr.mxu0 0.0
        %347 = vmatpush1.xpose.msra.mxu0 0.0
        %348 = vmatprep.subr.mxu0 0.0
        %349 = vmatpush1.xpose.msra.mxu0 0.0
        %350 = vmatprep.subr.mxu0 0.0
        %351 = vmatpush1.xpose.msra.mxu0 0.0
        %352 = vmatprep.subr.mxu0 0.0
        %353 = vmatpush1.xpose.msra.mxu0 0.0
        %354 = vmatprep.subr.mxu0 0.0
        %355 = vmatpush1.xpose.msra.mxu0 0.0
        %356 = vmatprep.subr.mxu0 0.0
        %357 = vmatpush1.xpose.msra.mxu0 0.0
        %358 = vmatprep.subr.mxu0 0.0
        %359 = vmatpush1.xpose.msra.mxu0 0.0
        %360 = vmatprep.subr.mxu0 0.0
        %361 = vmatpush1.xpose.msra.mxu0 0.0
        %362 = vmatprep.subr.mxu0 0.0
        %363 = vmatpush1.xpose.msra.mxu0 0.0
        %364 = vmatprep.subr.mxu0 0.0
        %365 = vmatpush1.xpose.msra.mxu0 0.0
        %366 = vmatprep.subr.mxu0 0.0
        %367 = vmatpush1.xpose.msra.mxu0 0.0
        %368 = vmatprep.subr.mxu0 0.0
        %369 = vmatpush1.xpose.msra.mxu0 0.0
        %370 = vmatprep.subr.mxu0 0.0
        %371 = vmatpush1.xpose.msra.mxu0 0.0
        %372 = vmatprep.subr.mxu0 0.0
        %373 = vmatpush1.xpose.msra.mxu0 0.0
        %374 = vmatprep.subr.mxu0 0.0
        %375 = vmatpush1.xpose.msra.mxu0 0.0
        %376 = vmatprep.subr.mxu0 0.0
        %377 = vmatpush1.xpose.msra.mxu0 0.0
        %378 = vmatprep.mubr.f32.mxu0 0.0
        %379 = vmatmul.mubr.f32.gmra.mrb[0].mxu0 %v228
        %v380 = vpop.f32.mrb[0].mxu0
        %v381 = vadd.f32 %v310, %v380
        %v382 = vpop.f32.mrb[0].mxu0
        %383 = vdwg.mxu0
        %v384 = vld [vmem:[#allocation2] sm:$0xff]
        %v385 = vadd.f32 %v384, %v313
        %386 = vst [vmem:[#allocation2] sm:$0xff] %v385
        %v387 = vld [vmem:[#allocation3] sm:$0xff]
        %v388 = vadd.f32 %v387, %v381
        %vm389 = vcmask 31744
        %390 = vst.msk [vmem:[#allocation3] sm:$0xff] %vm389, %v388
        // Predicated region
        $region37: #{tpu_custom_call.1} parent=27 // pred_check
          %p391 = pneg %p210
        $region38: #{tpu_custom_call.1} parent=27 // pred_check_branch
          %393 = sbr.rel (%p391) target = $region40
        $region39: #{tpu_custom_call.1} parent=27 // pred_region
          %v394 = vld [vmem:[#allocation2] sm:$0xff]
          %v395 = vld [vmem:[#allocation3] sm:$0xff]
          %396 = vadd.xlane.f32.xlu0 %v394
          %v397 = vpop.xlane.xlu0 %396
          %398 = vadd.xlane.f32.xlu0 %v395
          %v399 = vpop.xlane.xlu0 %398
          %vm400 = vcmp.gt.f32.partialorder %v397, 0.0
          %v401 = vmul.f32 %v397, %v397
          %v402 = vrcp.pop %v401
          %v403 = vmul.f32 %v399, %v402
          %v404 = vsel %vm400, %v403, 0.0
          %405 = vmatprep.subr.mxu0 0.0
          %406 = vmatpush1.xpose.msra.mxu0 %v394
          %407 = vmatprep.subr.mxu0 0.0
          %408 = vmatpush1.xpose.msra.mxu0 0.0
          %409 = vmatprep.subr.mxu0 0.0
          %410 = vmatpush1.xpose.msra.mxu0 0.0
          %411 = vmatprep.subr.mxu0 0.0
          %412 = vmatpush1.xpose.msra.mxu0 0.0
          %413 = vmatprep.subr.mxu0 0.0
          %414 = vmatpush1.xpose.msra.mxu0 0.0
          %415 = vmatprep.subr.mxu0 0.0
          %416 = vmatpush1.xpose.msra.mxu0 0.0
          %417 = vmatprep.subr.mxu0 0.0
          %418 = vmatpush1.xpose.msra.mxu0 0.0
          %419 = vmatprep.subr.mxu0 0.0
          %420 = vmatpush1.xpose.msra.mxu0 0.0
          %421 = vmatprep.subr.mxu0 0.0
          %422 = vmatpush1.xpose.msra.mxu0 0.0
          %423 = vmatprep.subr.mxu0 0.0
          %424 = vmatpush1.xpose.msra.mxu0 0.0
          %425 = vmatprep.subr.mxu0 0.0
          %426 = vmatpush1.xpose.msra.mxu0 0.0
          %427 = vmatprep.subr.mxu0 0.0
          %428 = vmatpush1.xpose.msra.mxu0 0.0
          %429 = vmatprep.subr.mxu0 0.0
          %430 = vmatpush1.xpose.msra.mxu0 0.0
          %431 = vmatprep.subr.mxu0 0.0
          %432 = vmatpush1.xpose.msra.mxu0 0.0
          %433 = vmatprep.subr.mxu0 0.0
          %434 = vmatpush1.xpose.msra.mxu0 0.0
          %435 = vmatprep.subr.mxu0 0.0
          %436 = vmatpush1.xpose.msra.mxu0 0.0
          %437 = vmatprep.subr.mxu0 0.0
          %438 = vmatpush1.xpose.msra.mxu0 0.0
          %439 = vmatprep.subr.mxu0 0.0
          %440 = vmatpush1.xpose.msra.mxu0 0.0
          %441 = vmatprep.subr.mxu0 0.0
          %442 = vmatpush1.xpose.msra.mxu0 0.0
          %443 = vmatprep.subr.mxu0 0.0
          %444 = vmatpush1.xpose.msra.mxu0 0.0
          %445 = vmatprep.subr.mxu0 0.0
          %446 = vmatpush1.xpose.msra.mxu0 0.0
          %447 = vmatprep.subr.mxu0 0.0
          %448 = vmatpush1.xpose.msra.mxu0 0.0
          %449 = vmatprep.subr.mxu0 0.0
          %450 = vmatpush1.xpose.msra.mxu0 0.0
          %451 = vmatprep.subr.mxu0 0.0
          %452 = vmatpush1.xpose.msra.mxu0 0.0
          %453 = vmatprep.subr.mxu0 0.0
          %454 = vmatpush1.xpose.msra.mxu0 0.0
          %455 = vmatprep.subr.mxu0 0.0
          %456 = vmatpush1.xpose.msra.mxu0 0.0
          %457 = vmatprep.subr.mxu0 0.0
          %458 = vmatpush1.xpose.msra.mxu0 0.0
          %459 = vmatprep.subr.mxu0 0.0
          %460 = vmatpush1.xpose.msra.mxu0 0.0
          %461 = vmatprep.subr.mxu0 0.0
          %462 = vmatpush1.xpose.msra.mxu0 0.0
          %463 = vmatprep.subr.mxu0 0.0
          %464 = vmatpush1.xpose.msra.mxu0 0.0
          %465 = vmatprep.subr.mxu0 0.0
          %466 = vmatpush1.xpose.msra.mxu0 0.0
          %467 = vmatprep.subr.mxu0 0.0
          %468 = vmatpush1.xpose.msra.mxu0 0.0
          %469 = vmatprep.mubr.f32.mxu0 0.0
          %470 = vmatmul.mubr.f32.gmra.mrb[0].mxu0 1.0
          %v471 = vpop.f32.mrb[0].mxu0
          %v472 = vadd.f32 0.0, %v471
          %v473 = vpop.f32.mrb[0].mxu0
          %474 = vdwg.mxu0
          %475 = vmatprep.subr.mxu0 0.0
          %476 = vmatpush1.xpose.msra.mxu0 %v395
          %477 = vmatprep.subr.mxu0 0.0
          %478 = vmatpush1.xpose.msra.mxu0 0.0
          %479 = vmatprep.subr.mxu0 0.0
          %480 = vmatpush1.xpose.msra.mxu0 0.0
          %481 = vmatprep.subr.mxu0 0.0
          %482 = vmatpush1.xpose.msra.mxu0 0.0
          %483 = vmatprep.subr.mxu0 0.0
          %484 = vmatpush1.xpose.msra.mxu0 0.0
          %485 = vmatprep.subr.mxu0 0.0
          %486 = vmatpush1.xpose.msra.mxu0 0.0
          %487 = vmatprep.subr.mxu0 0.0
          %488 = vmatpush1.xpose.msra.mxu0 0.0
          %489 = vmatprep.subr.mxu0 0.0
          %490 = vmatpush1.xpose.msra.mxu0 0.0
          %491 = vmatprep.subr.mxu0 0.0
          %492 = vmatpush1.xpose.msra.mxu0 0.0
          %493 = vmatprep.subr.mxu0 0.0
          %494 = vmatpush1.xpose.msra.mxu0 0.0
          %495 = vmatprep.subr.mxu0 0.0
          %496 = vmatpush1.xpose.msra.mxu0 0.0
          %497 = vmatprep.subr.mxu0 0.0
          %498 = vmatpush1.xpose.msra.mxu0 0.0
          %499 = vmatprep.subr.mxu0 0.0
          %500 = vmatpush1.xpose.msra.mxu0 0.0
          %501 = vmatprep.subr.mxu0 0.0
          %502 = vmatpush1.xpose.msra.mxu0 0.0
          %503 = vmatprep.subr.mxu0 0.0
          %504 = vmatpush1.xpose.msra.mxu0 0.0
          %505 = vmatprep.subr.mxu0 0.0
          %506 = vmatpush1.xpose.msra.mxu0 0.0
          %507 = vmatprep.subr.mxu0 0.0
          %508 = vmatpush1.xpose.msra.mxu0 0.0
          %509 = vmatprep.subr.mxu0 0.0
          %510 = vmatpush1.xpose.msra.mxu0 0.0
          %511 = vmatprep.subr.mxu0 0.0
          %512 = vmatpush1.xpose.msra.mxu0 0.0
          %513 = vmatprep.subr.mxu0 0.0
          %514 = vmatpush1.xpose.msra.mxu0 0.0
          %515 = vmatprep.subr.mxu0 0.0
          %516 = vmatpush1.xpose.msra.mxu0 0.0
          %517 = vmatprep.subr.mxu0 0.0
          %518 = vmatpush1.xpose.msra.mxu0 0.0
          %519 = vmatprep.subr.mxu0 0.0
          %520 = vmatpush1.xpose.msra.mxu0 0.0
          %521 = vmatprep.subr.mxu0 0.0
          %522 = vmatpush1.xpose.msra.mxu0 0.0
          %523 = vmatprep.subr.mxu0 0.0
          %524 = vmatpush1.xpose.msra.mxu0 0.0
          %525 = vmatprep.subr.mxu0 0.0
          %526 = vmatpush1.xpose.msra.mxu0 0.0
          %527 = vmatprep.subr.mxu0 0.0
          %528 = vmatpush1.xpose.msra.mxu0 0.0
          %529 = vmatprep.subr.mxu0 0.0
          %530 = vmatpush1.xpose.msra.mxu0 0.0
          %531 = vmatprep.subr.mxu0 0.0
          %532 = vmatpush1.xpose.msra.mxu0 0.0
          %533 = vmatprep.subr.mxu0 0.0
          %534 = vmatpush1.xpose.msra.mxu0 0.0
          %535 = vmatprep.subr.mxu0 0.0
          %536 = vmatpush1.xpose.msra.mxu0 0.0
          %537 = vmatprep.subr.mxu0 0.0
          %538 = vmatpush1.xpose.msra.mxu0 0.0
          %539 = vmatprep.mubr.f32.mxu0 0.0
          %540 = vmatmul.mubr.f32.gmra.mrb[0].mxu0 1.0
          %v541 = vpop.f32.mrb[0].mxu0
          %v542 = vadd.f32 0.0, %v541
          %v543 = vpop.f32.mrb[0].mxu0
          %544 = vdwg.mxu0
          %vm545 = vcmp.gt.f32.partialorder %v472, 0.0
          %v546 = vmul.f32 %v472, %v472
          %v547 = vrcp.pop %v546
          %v548 = vmul.f32 %v542, %v547
          %v549 = vsel %vm545, %v548, 0.0
          %v550 = vadd.f32 %v404, %v549
          %v551 = vrsqrt.pop %v550
          %v552 = vmul.f32 %v550, %v551
          %vm553 = vcmp.eq.f32.partialorder %v550, inf
          %v554 = vsel %vm553, %v550, %v552
          %vm555 = vcmp.eq.f32.partialorder %v550, 0.0
          %v556 = vand.u32 %v550, 2147483648
          %v557 = vsel %vm555, %v556, %v554
          %v558 = vsub.f32 3.0, %v557
          %v559 = vmul.f32 %v558, %v558
          %v560 = vadd.f32 %v559, 1.0
          %v561 = vlog2.pop %v560
          %v562 = vmul.f32 %v561, 0.6931472
          %v563 = vlaneseq
          %v564 = vand.u32 %v563, 127
          %vm565 = vcmp.lt.s32.totalorder %v217, %v564
          %v566 = vsel %vm400, 1, 0
          %vm567 = vcmp.eq.s32.totalorder %v566, 1
          %vm568 = vmand %vm565, %vm567
          %vm569 = vmand %vm568, %vm545
          %v570 = vsel %vm569, %v562, 0.0
          %vm571 = vcmask 64512
          %v572 = vsel %vm571, %v570, 0.0
          %573 = vadd.xlane.f32.xlu0 %v572
          %v574 = vpop.xlane.xlu0 %573
          %v575 = vrot.slane %v574, 4
          %v576 = vadd.f32 %v574, %v575
          %v577 = vrot.slane %v576, 2
          %v578 = vadd.f32 %v576, %v577
          %v579 = vrot.slane %v578, 1
          %v580 = vadd.f32 %v578, %v579
          %s581 = vtos %v580
          %v582 = vsel %vm400, %v218, 0
          %v583 = vrot.slane %v582, 4
          %vm584 = vcmp.gt.s32.totalorder %v582, %v583
          %v585 = vsel %vm584, %v582, %v583
          %v586 = vrot.slane %v585, 2
          %vm587 = vcmp.gt.s32.totalorder %v585, %v586
          %v588 = vsel %vm587, %v585, %v586
          %v589 = vrot.slane %v588, 1
          %vm590 = vcmp.gt.s32.totalorder %v588, %v589
          %v591 = vsel %vm590, %v588, %v589
          %s592 = vtos %v591
          %s593 = scvt.s32.f32 %s592
          %s594 = ssub.f32 %s593, 1.0
          %s595 = smul.f32 %s593, %s594
          %s596 = smax.f32 %s595, 1.0
          %p597 = scmp.gt.s32.totalorder %s592, 1
          %v598 = vstv %s596
          %v599 = vrcp.pop %v598
          %s600 = vtos %v599
          %s601 = smul.f32 %s581, %s600
          %s602 = scalar_select %p597, %s601, 0.0
          %v603 = vstv %s602
          %604 = vst [vmem:[%s199] sm:$0xff] %v603
        $region40: #{tpu_custom_call.1} parent=27 // pred_fallthru
          _
        %s605 = sand.u32 %s95, 1
        %s606 = scalar_lea.sflag [#allocation6], %s605
        %s607 = sand.u32 %s95, 1
        %s608 = smul.addr %s607, 8
        %s609 = scalar_lea.vmem [#allocation7], %s608
        // Predicated region
        $region41: #{tpu_custom_call.1} parent=27 // pred_check
          %p610 = pneg %p105
        $region42: #{tpu_custom_call.1} parent=27 // pred_check_branch
          %612 = sbr.rel (%p610) target = $region44
        $region43: #{tpu_custom_call.1} parent=27 // pred_region
          %s614 = ssub.s32 128, 128
          %615 = vsyncadd %s606, %s614
          %s616 = smul.addr %s23, 128
          %s617 = scalar_lea.hbm %s2, %s616
          %s619 = sshll.u32 %s609, 4
          %s620 = int_to_ptr.vmem [resolvable:$true] %s619
          %622 = dma.vmem_to_hbm [thread:$0]  %s620, 128, %s617, %s606
        $region44: #{tpu_custom_call.1} parent=27 // pred_fallthru
          _
      $region28: #{tpu_custom_call.1} parent=5 // pred_fallthru
        _
      %p623 = scmp.le.s32.totalorder 2, %s14
      // Predicated region
      $region45: #{tpu_custom_call.1} parent=5 // pred_check
        %p624 = pneg %p623
      $region46: #{tpu_custom_call.1} parent=5 // pred_check_branch
        %626 = sbr.rel (%p624) target = $region48
      $region47: #{tpu_custom_call.1} parent=5 // pred_region
        %s627 = ssub.s32 %s14, 2
        // Predicated region
        $region49: #{tpu_custom_call.1} parent=47 // pred_check
          %p628 = pneg %p111
        $region50: #{tpu_custom_call.1} parent=47 // pred_check_branch
          %630 = sbr.rel (%p628) target = $region52
        $region51: #{tpu_custom_call.1} parent=47 // pred_region
          %s631 = sand.u32 %s96, 1
          %s632 = scalar_lea.sflag [#allocation6], %s631
          %s633 = sand.u32 %s96, 1
          %s634 = smul.addr %s633, 8
          %s635 = scalar_lea.vmem [#allocation7], %s634
          %636 = dma.done %s632, 128
        $region52: #{tpu_custom_call.1} parent=47 // pred_fallthru
          _
      $region48: #{tpu_custom_call.1} parent=5 // pred_fallthru
        _
    $region6: #{tpu_custom_call.1} parent=1 // loop_footer
      %s18 = sadd.s32 1, %s14
    $region7: #{tpu_custom_call.1} parent=1 // loop_footer_branch
      %13 = sbr.rel target = $region3
    $region8: #{tpu_custom_call.1} parent=1 // loop_exit
      _
    %637 = vsyncpa [#allocation5], 1
    %s638 = scalar_lea.sflag [#allocation5], 1
    %639 = vsyncpa %s638, 1
    %640 = vsyncpa [#allocation6], 1
    %s641 = scalar_lea.sflag [#allocation6], 1
    %642 = vsyncpa %s641, 1

</llo_original>
